<compile_context>
chip_gen: v5e
topology: v5e:2x2
jax: 0.10.0
libtpu: 0.0.40
codegen_flags: <defaults>
</compile_context>

<pallas_src>
import math

import jax
import jax.numpy as jnp
from jax.experimental import pallas as pl
from jax.experimental.pallas import tpu as pltpu


def _affine_kernel(alpha_ref, beta_ref, x_ref, o_ref):
    # alpha_ref / beta_ref: (1, L), resident in VMEM across all grid steps.
    # x_ref / o_ref:        (tile_r, L) row tile.
    a = alpha_ref[...]
    b = beta_ref[...]
    x = x_ref[...]
    o_ref[...] = (b + a * x).astype(o_ref.dtype)


def affine(x, alpha, beta, *, target_tile_bytes=2 * 1024 * 1024):
    """x: (..., D); alpha, beta broadcastable with last dim D. Returns beta + alpha * x."""
    orig_shape = x.shape
    D = orig_shape[-1]
    assert alpha.shape[-1] == D and beta.shape[-1] == D

    R = 1
    for s in orig_shape[:-1]:
        R *= s
    x2d = x.reshape(R, D)

    itemsize = jnp.dtype(x.dtype).itemsize
    sublane = max(8, 32 // itemsize)  # 8 for f32, 16 for bf16, 32 for int8

    # Lane-dense repacking: merge `rep` rows of width D into one row of width
    # L = rep * D (a multiple of 128 lanes => unmasked, full-rate stores).
    rep = math.lcm(D, 128) // D
    if rep > 64:
        # Pathological D (huge lcm): keep full-D rows.  Block last dim == array
        # last dim, which is still a legal (if not lane-optimal) layout.
        rep = 1
    L = D * rep

    a_row = jnp.tile(alpha.reshape(D), rep).reshape(1, L)
    b_row = jnp.tile(beta.reshape(D), rep).reshape(1, L)

    # Pick a ~2 MiB row tile (multiple of the sublane packing), clamped to what
    # the data actually needs.
    row_bytes = L * itemsize
    tile_r = max(1, target_tile_bytes // row_bytes)
    tile_r = max(sublane, (tile_r // sublane) * sublane)
    rows_needed = -(-R // rep)
    tile_r = min(tile_r, ((rows_needed + sublane - 1) // sublane) * sublane)

    # Pad rows so the packed view splits evenly into (tile_r, L) blocks.
    chunk = rep * tile_r
    R_pad = ((R + chunk - 1) // chunk) * chunk
    if R_pad != R:
        x2d = jnp.pad(x2d, ((0, R_pad - R), (0, 0)))
    rows = R_pad // rep
    x_packed = x2d.reshape(rows, L)  # contiguous reshape: free
    grid = (rows // tile_r,)

    out_packed = pl.pallas_call(
        _affine_kernel,
        out_shape=jax.ShapeDtypeStruct((rows, L), x.dtype),
        grid_spec=pltpu.PrefetchScalarGridSpec(
            num_scalar_prefetch=0,
            grid=grid,
            in_specs=[
                pl.BlockSpec((1, L), lambda i: (0, 0)),       # alpha (resident)
                pl.BlockSpec((1, L), lambda i: (0, 0)),       # beta  (resident)
                pl.BlockSpec((tile_r, L), lambda i: (i, 0)),  # x row tile
            ],
            out_specs=pl.BlockSpec((tile_r, L), lambda i: (i, 0)),
        ),
        compiler_params=pltpu.CompilerParams(
            dimension_semantics=("parallel",),   # megacore-shardable on v7x
            vmem_limit_bytes=32 * 1024 * 1024,   # headroom over v5e's 16 MiB default
        ),
    )(a_row, b_row, x_packed)

    out2d = out_packed.reshape(R_pad, D)
    if R_pad != R:
        out2d = out2d[:R]
    return out2d.reshape(orig_shape)


if __name__ == "__main__":
    key = jax.random.PRNGKey(0)
    kx, ka, kb, kx2 = jax.random.split(key, 4)

    # --- Primary check: small shape consistent with the module (batch, seq, dim) ---
    B, N, D = 2, 8, 32
    x = jax.random.normal(kx, (B, N, D), dtype=jnp.float32)
    alpha = jnp.ones((1, 1, D), jnp.float32) + 0.1 * jax.random.normal(ka, (1, 1, D), jnp.float32)
    beta = jnp.zeros((1, 1, D), jnp.float32) + 0.1 * jax.random.normal(kb, (1, 1, D), jnp.float32)

    out = jax.block_until_ready(affine(x, alpha, beta))
    ref = beta + alpha * x
    assert out.shape == (B, N, D)
    assert jnp.allclose(out, ref, atol=1e-6, rtol=1e-6)

    # --- Secondary check: lane-dense D (multiple of 128) with bf16 activations ---
    B2, N2, D2 = 2, 16, 128
    x2 = jax.random.normal(kx2, (B2, N2, D2), dtype=jnp.bfloat16)
    alpha2 = jnp.ones((1, 1, D2), jnp.float32) * 1.25
    beta2 = jnp.full((1, 1, D2), 0.5, jnp.float32)

    out2 = jax.block_until_ready(affine(x2, alpha2, beta2))
    ref2 = (beta2 + alpha2 * x2).astype(jnp.bfloat16)
    assert out2.shape == (B2, N2, D2)
    assert out2.dtype == jnp.bfloat16
    assert jnp.allclose(out2.astype(jnp.float32), ref2.astype(jnp.float32), atol=1e-2, rtol=1e-2)

    print("KERNEL_OK")
</pallas_src>

<mosaic_0001>
module attributes {stable_mosaic.version = 11 : i64} {
  func.func @_affine_kernel(%arg0: i32, %arg1: memref<1x128xf32, #tpu.memory_space<vmem>>, %arg2: memref<1x128xf32, #tpu.memory_space<vmem>>, %arg3: memref<8x128xf32, #tpu.memory_space<vmem>>, %arg4: memref<8x128xf32, #tpu.memory_space<vmem>>) attributes {dimension_semantics = [#tpu.dimension_semantics<parallel>], iteration_bounds = array<i64: 1>, scalar_prefetch = 0 : i64, scratch_operands = 0 : i64, tpu.core_type = #tpu.core_type<tc>, window_params = [{pipeline_mode = #tpu.pipeline_mode<synchronous>, transform_indices = @transform_0, window_bounds = array<i64: 1, 128>}, {pipeline_mode = #tpu.pipeline_mode<synchronous>, transform_indices = @transform_1, window_bounds = array<i64: 1, 128>}, {transform_indices = @transform_2, window_bounds = array<i64: 8, 128>}, {transform_indices = @transform_3, window_bounds = array<i64: 8, 128>}]} {
    %c0 = arith.constant 0 : index
    %c0_0 = arith.constant 0 : index
    %0 = vector.load %arg1[%c0, %c0_0] : memref<1x128xf32, #tpu.memory_space<vmem>>, vector<1x128xf32>
    %c0_1 = arith.constant 0 : index
    %c0_2 = arith.constant 0 : index
    %1 = vector.load %arg2[%c0_1, %c0_2] : memref<1x128xf32, #tpu.memory_space<vmem>>, vector<1x128xf32>
    %c0_3 = arith.constant 0 : index
    %c0_4 = arith.constant 0 : index
    %2 = vector.load %arg3[%c0_3, %c0_4] : memref<8x128xf32, #tpu.memory_space<vmem>>, vector<8x128xf32>
    %3 = vector.broadcast %0 : vector<1x128xf32> to vector<8x128xf32>
    %4 = arith.mulf %3, %2 : vector<8x128xf32>
    %5 = vector.broadcast %1 : vector<1x128xf32> to vector<8x128xf32>
    %6 = arith.addf %5, %4 : vector<8x128xf32>
    %c0_5 = arith.constant 0 : index
    %c0_6 = arith.constant 0 : index
    %7 = vector.load %arg4[%c0_5, %c0_6] : memref<8x128xf32, #tpu.memory_space<vmem>>, vector<8x128xf32>
    tpu.vector_store %arg4[%c0_5, %c0_6], %6 {strides = array<i32>} : memref<8x128xf32, #tpu.memory_space<vmem>>, vector<8x128xf32>,
    return
  }
  func.func @transform_0(%arg0: i32) -> (i32, i32) {
    %c0_i32 = arith.constant 0 : i32
    %c0_i32_0 = arith.constant 0 : i32
    %c0_i32_1 = arith.constant 0 : i32
    return %c0_i32, %c0_i32_0 : i32, i32
  }
  func.func @transform_1(%arg0: i32) -> (i32, i32) {
    %c0_i32 = arith.constant 0 : i32
    %c0_i32_0 = arith.constant 0 : i32
    %c0_i32_1 = arith.constant 0 : i32
    return %c0_i32, %c0_i32_0 : i32, i32
  }
  func.func @transform_2(%arg0: i32) -> (i32, i32) {
    %c0_i32 = arith.constant 0 : i32
    %c0_i32_0 = arith.constant 0 : i32
    return %arg0, %c0_i32 : i32, i32
  }
  func.func @transform_3(%arg0: i32) -> (i32, i32) {
    %c0_i32 = arith.constant 0 : i32
    %c0_i32_0 = arith.constant 0 : i32
    return %arg0, %c0_i32 : i32, i32
  }
}

</mosaic_0001>

<llo_original>
// kernel: tpu_custom_call.1
$region0: #{tpu_custom_call.1}
  #allocation0 [shape = 'u32[]', space=smem, size = 0x4, offset = 0x4, fixed_abs, tag = 'smem constant byte address 0x4 - core index']
  #allocation1 [shape = 'u32[72,128]{1,0:T(1,128)}', space=vmem, size = 0x9000, scoped, tag = 'internal scratch']
  %s0 = inlined_call_operand.hbm [shape: f32[1,128], index: 0, kind: input, shape index: {}]
  %s1 = inlined_call_operand.hbm [shape: f32[1,128], index: 1, kind: input, shape index: {}]
  %s2 = inlined_call_operand.hbm [shape: f32[8,128], index: 2, kind: input, shape index: {}]
  %s3 = inlined_call_operand.hbm [shape: f32[8,128], index: 3, kind: output, shape index: {}]
  %s4 = sld [smem:[#allocation0]]
  $region34: #{tpu_custom_call.1} parent=0
    _
  %s6 = ssub.s32 1, %s4
  %s7 = scalar_select 0, %s6, %s4
  $region1: #{tpu_custom_call.1} parent=0
    #allocation2 [shape = 'u8[512]{0}', space=vmem, size = 0x400, scoped, tag = 'input window, operand 0, single buffered']
    #allocation3 [shape = 's32[1]{0}', space=sflag, size = 0x4, scoped, tag = 'scoped memory for tpu_custom_call.1']
    #allocation4 [shape = 's32[1]{0}', space=sflag, size = 0x4, scoped, tag = 'scoped memory for tpu_custom_call.1']
    #allocation5 [shape = 'u8[512]{0}', space=vmem, size = 0x400, scoped, tag = 'input window, operand 1, single buffered']
    #allocation6 [shape = 's32[1]{0}', space=sflag, size = 0x4, scoped, tag = 'scoped memory for tpu_custom_call.1']
    #allocation7 [shape = 'u8[4096]{0}', space=vmem, size = 0x1000, scoped, tag = 'input window, operand 2, single buffered']
    #allocation8 [shape = 'u8[4096]{0}', space=vmem, size = 0x1000, scoped, tag = 'output window, operand 0, single buffered']
    %8 = vsyncpa [#allocation3], 0
    %9 = vsyncpa [#allocation6], 0
    %10 = vsyncpa [#allocation4], 0
    // Predicated region
    $region2: #{tpu_custom_call.1} parent=1 // pred_check
      _
    $region3: #{tpu_custom_call.1} parent=1 // pred_check_branch
      %12 = sbr.rel (0) target = $region5
    $region4: #{tpu_custom_call.1} parent=1 // pred_region
      %14 = vsyncadd [#allocation3], 0
      %s16 = sshll.u32 %s0, 4
      %s17 = int_to_ptr.hbm [resolvable:$true] %s16
      %s18 = sshll.u32 [#allocation2], 4
      %s19 = int_to_ptr.vmem [resolvable:$true] %s18
      %21 = dma.hbm_to_vmem [thread:$0]  %s17, 16, %s19, [#allocation3]
    $region5: #{tpu_custom_call.1} parent=1 // pred_fallthru
      _
    // Predicated region
    $region6: #{tpu_custom_call.1} parent=1 // pred_check
      _
    $region7: #{tpu_custom_call.1} parent=1 // pred_check_branch
      %23 = sbr.rel (0) target = $region9
    $region8: #{tpu_custom_call.1} parent=1 // pred_region
      %25 = vsyncadd [#allocation6], 0
      %s27 = sshll.u32 %s1, 4
      %s28 = int_to_ptr.hbm [resolvable:$true] %s27
      %s29 = sshll.u32 [#allocation5], 4
      %s30 = int_to_ptr.vmem [resolvable:$true] %s29
      %32 = dma.hbm_to_vmem [thread:$0]  %s28, 16, %s30, [#allocation6]
    $region9: #{tpu_custom_call.1} parent=1 // pred_fallthru
      _
    // Predicated region
    $region10: #{tpu_custom_call.1} parent=1 // pred_check
      _
    $region11: #{tpu_custom_call.1} parent=1 // pred_check_branch
      %34 = sbr.rel (0) target = $region13
    $region12: #{tpu_custom_call.1} parent=1 // pred_region
      %36 = vsyncadd [#allocation6], 0
      %s38 = sshll.u32 %s2, 4
      %s39 = int_to_ptr.hbm [resolvable:$true] %s38
      %s40 = sshll.u32 [#allocation7], 4
      %s41 = int_to_ptr.vmem [resolvable:$true] %s40
      %43 = dma.hbm_to_vmem [thread:$0]  %s39, 128, %s41, [#allocation6]
    $region13: #{tpu_custom_call.1} parent=1 // pred_fallthru
      _
    // Predicated region
    $region14: #{tpu_custom_call.1} parent=1 // pred_check
      _
    $region15: #{tpu_custom_call.1} parent=1 // pred_check_branch
      %45 = sbr.rel (0) target = $region17
    $region16: #{tpu_custom_call.1} parent=1 // pred_region
      %47 = dma.done [#allocation3], 16
    $region17: #{tpu_custom_call.1} parent=1 // pred_fallthru
      _
    // Predicated region
    $region18: #{tpu_custom_call.1} parent=1 // pred_check
      _
    $region19: #{tpu_custom_call.1} parent=1 // pred_check_branch
      %49 = sbr.rel (0) target = $region21
    $region20: #{tpu_custom_call.1} parent=1 // pred_region
      %51 = dma.done [#allocation6], 16
    $region21: #{tpu_custom_call.1} parent=1 // pred_fallthru
      _
    // Predicated region
    $region22: #{tpu_custom_call.1} parent=1 // pred_check
      _
    $region23: #{tpu_custom_call.1} parent=1 // pred_check_branch
      %53 = sbr.rel (0) target = $region25
    $region24: #{tpu_custom_call.1} parent=1 // pred_region
      %55 = dma.done [#allocation6], 128
    $region25: #{tpu_custom_call.1} parent=1 // pred_fallthru
      _
    %v56 = vld [vmem:[#allocation2] sm:$0x1]
    %v57 = vld [vmem:[#allocation5] sm:$0x1]
    %v58 = vld [vmem:[#allocation7] sm:$0xff]
    %v60 = vperm.slane %v56, 0
    %v62 = vmul.f32 %v60, %v58
    %v64 = vperm.slane %v57, 0
    %v66 = vadd.f32 %v64, %v62
    %67 = vst [vmem:[#allocation8] sm:$0xff] %v66
    // Predicated region
    $region26: #{tpu_custom_call.1} parent=1 // pred_check
      _
    $region27: #{tpu_custom_call.1} parent=1 // pred_check_branch
      %69 = sbr.rel (0) target = $region29
    $region28: #{tpu_custom_call.1} parent=1 // pred_region
      %71 = vsyncadd [#allocation4], 0
      %s73 = sshll.u32 [#allocation8], 4
      %s74 = int_to_ptr.vmem [resolvable:$true] %s73
      %s75 = sshll.u32 %s3, 4
      %s76 = int_to_ptr.hbm [resolvable:$true] %s75
      %78 = dma.vmem_to_hbm [thread:$0]  %s74, 128, %s76, [#allocation4]
    $region29: #{tpu_custom_call.1} parent=1 // pred_fallthru
      _
    // Predicated region
    $region30: #{tpu_custom_call.1} parent=1 // pred_check
      _
    $region31: #{tpu_custom_call.1} parent=1 // pred_check_branch
      %80 = sbr.rel (0) target = $region33
    $region32: #{tpu_custom_call.1} parent=1 // pred_region
      %82 = dma.done [#allocation4], 128
    $region33: #{tpu_custom_call.1} parent=1 // pred_fallthru
      _
    %83 = vsyncpa [#allocation3], 1
    %84 = vsyncpa [#allocation6], 1
    %85 = vsyncpa [#allocation4], 1

</llo_original>
